<compile_context>
chip_gen: v5e
topology: v5e:2x2
jax: 0.10.0
libtpu: 0.0.40
codegen_flags: <defaults>
</compile_context>

<pallas_src>
import functools

import jax
import jax.numpy as jnp
from jax.experimental import pallas as pl
from jax.experimental.pallas import tpu as pltpu


def _round_up(x, m):
    return ((x + m - 1) // m) * m


def _ffn_kernel(x_ref, w1_ref, b1_ref, w2_ref, b2_ref, o_ref, acc_ref):
    # x_ref  : (tm, dm_p)    row tile of the input
    # w1_ref : (dm_p, tn_h)  hidden-chunk slab of W1
    # b1_ref : (1, tn_h)
    # w2_ref : (tn_h, dm_p)  hidden-chunk slab of W2
    # b2_ref : (1, dm_p)
    # o_ref  : (tm, dm_p)
    # acc_ref: (tm, dm_p) f32 VMEM accumulator, lives across hidden chunks
    hc = pl.program_id(1)

    @pl.when(hc == 0)
    def _init():
        acc_ref[...] = jnp.zeros_like(acc_ref)

    # linear1 chunk + bias + ReLU (MXU matmul, f32 accumulation)
    h = jnp.dot(x_ref[...], w1_ref[...], preferred_element_type=jnp.float32)
    h = jnp.maximum(h + b1_ref[...], 0.0)
    # dropout: identity (eval mode)

    # Partial linear2: contract this hidden chunk into the accumulator.
    # (Activation is narrowed to the weight dtype for the MXU; the
    #  accumulation itself stays in f32.)
    acc_ref[...] += jnp.dot(h.astype(w2_ref.dtype), w2_ref[...],
                            preferred_element_type=jnp.float32)

    @pl.when(hc == pl.num_programs(1) - 1)
    def _finalize():
        o_ref[...] = (acc_ref[...] + b2_ref[...]).astype(o_ref.dtype)


@functools.partial(jax.jit, static_argnames=("tm", "tn_h"))
def ffn_pallas(x, w1, b1, w2, b2, *, tm=256, tn_h=512):
    """x: [M, d_model]; w1: [d_model, d_hidden]; w2: [d_hidden, d_model].

    tm   : row tile (multiple of 8; 256/512 recommended on v6e/v7x, 128 on v5e)
    tn_h : hidden-dim chunk (multiple of 128; 512-2048 recommended)
    """
    M, d_model = x.shape
    d_hidden = w1.shape[1]

    # --- pad to TPU-friendly shapes (zeros are inert through the FFN) -----
    dm_p = _round_up(d_model, 128)                 # lane-dense feature dim
    tn_h = min(tn_h, _round_up(d_hidden, 128))     # don't over-tile tiny hidden
    dh_p = _round_up(d_hidden, tn_h)
    tm = min(tm, _round_up(M, 8))                  # don't over-tile tiny M
    m_p = _round_up(M, tm)

    xp = jnp.pad(x, ((0, m_p - M), (0, dm_p - d_model)))
    w1p = jnp.pad(w1, ((0, dm_p - d_model), (0, dh_p - d_hidden)))
    b1p = jnp.pad(b1, ((0, 0), (0, dh_p - d_hidden)))
    w2p = jnp.pad(w2, ((0, dh_p - d_hidden), (0, dm_p - d_model)))
    b2p = jnp.pad(b2, ((0, 0), (0, dm_p - d_model)))

    grid = (m_p // tm, dh_p // tn_h)

    itemsize = x.dtype.itemsize
    cost = pl.CostEstimate(
        flops=4 * m_p * dh_p * dm_p,               # two matmuls
        transcendentals=0,
        bytes_accessed=(xp.size + w1p.size + b1p.size + w2p.size + b2p.size
                        + m_p * dm_p) * itemsize,
    )

    out_p = pl.pallas_call(
        _ffn_kernel,
        out_shape=jax.ShapeDtypeStruct((m_p, dm_p), x.dtype),
        grid_spec=pltpu.PrefetchScalarGridSpec(
            num_scalar_prefetch=0,
            grid=grid,
            in_specs=[
                pl.BlockSpec((tm, dm_p), lambda i, h: (i, 0)),    # x rows
                pl.BlockSpec((dm_p, tn_h), lambda i, h: (0, h)),  # W1 chunk
                pl.BlockSpec((1, tn_h), lambda i, h: (0, h)),     # b1 chunk
                pl.BlockSpec((tn_h, dm_p), lambda i, h: (h, 0)),  # W2 chunk
                pl.BlockSpec((1, dm_p), lambda i, h: (0, 0)),     # b2
            ],
            out_specs=pl.BlockSpec((tm, dm_p), lambda i, h: (i, 0)),
            scratch_shapes=[pltpu.VMEM((tm, dm_p), jnp.float32)],
        ),
        compiler_params=pltpu.CompilerParams(
            dimension_semantics=("parallel", "arbitrary"),
            vmem_limit_bytes=64 * 1024 * 1024,
        ),
        cost_estimate=cost,
    )(xp, w1p, b1p, w2p, b2p)

    return out_p[:M, :d_model]


def init_ffn_params(key, d_model, d_hidden, dtype=jnp.float32):
    """Deterministic init matching nn.Linear's U(-1/sqrt(fan_in), 1/sqrt(fan_in)).

    Weights are returned already transposed to (in, out) layout.
    """
    k1, k2, k3, k4 = jax.random.split(key, 4)
    bound1 = 1.0 / jnp.sqrt(d_model)
    bound2 = 1.0 / jnp.sqrt(d_hidden)
    w1 = jax.random.uniform(k1, (d_model, d_hidden), dtype, -bound1, bound1)
    b1 = jax.random.uniform(k2, (1, d_hidden), dtype, -bound1, bound1)
    w2 = jax.random.uniform(k3, (d_hidden, d_model), dtype, -bound2, bound2)
    b2 = jax.random.uniform(k4, (1, d_model), dtype, -bound2, bound2)
    return w1, b1, w2, b2


if __name__ == "__main__":
    key = jax.random.PRNGKey(0)

    # --- test 1: toy dims (exercises the padding path, 1 hidden chunk) ----
    batch, seq, d_model, d_hidden = 2, 8, 32, 64
    kx, kp, key = jax.random.split(key, 3)
    x = jax.random.normal(kx, (batch, seq, d_model), jnp.float32)
    w1, b1, w2, b2 = init_ffn_params(kp, d_model, d_hidden)
    x2d = x.reshape(batch * seq, d_model)
    out = ffn_pallas(x2d, w1, b1, w2, b2).reshape(batch, seq, d_model)
    jax.block_until_ready(out)
    ref = (jnp.maximum(x2d @ w1 + b1, 0.0) @ w2 + b2).reshape(batch, seq, d_model)
    assert jnp.allclose(out, ref, atol=1e-3, rtol=1e-3), "mismatch (test 1)"

    # --- test 2: 128-aligned dims, multi-chunk hidden reduction -----------
    batch, seq, d_model, d_hidden = 2, 64, 128, 256
    kx, kp = jax.random.split(key)
    x = jax.random.normal(kx, (batch, seq, d_model), jnp.float32)
    w1, b1, w2, b2 = init_ffn_params(kp, d_model, d_hidden)
    x2d = x.reshape(batch * seq, d_model)
    out2 = ffn_pallas(x2d, w1, b1, w2, b2, tm=128, tn_h=128)
    jax.block_until_ready(out2)
    ref2 = jnp.maximum(x2d @ w1 + b1, 0.0) @ w2 + b2
    assert jnp.allclose(out2, ref2, atol=1e-3, rtol=1e-3), "mismatch (test 2)"

    print("KERNEL_OK")
</pallas_src>

<mosaic_0001>
module attributes {stable_mosaic.version = 11 : i64} {
  func.func @_ffn_kernel(%arg0: i32, %arg1: i32, %arg2: memref<16x128xf32, #tpu.memory_space<vmem>>, %arg3: memref<128x128xf32, #tpu.memory_space<vmem>>, %arg4: memref<1x128xf32, #tpu.memory_space<vmem>>, %arg5: memref<128x128xf32, #tpu.memory_space<vmem>>, %arg6: memref<1x128xf32, #tpu.memory_space<vmem>>, %arg7: memref<16x128xf32, #tpu.memory_space<vmem>>, %arg8: memref<16x128xf32, #tpu.memory_space<vmem>>) attributes {dimension_semantics = [#tpu.dimension_semantics<parallel>, #tpu.dimension_semantics<arbitrary>], iteration_bounds = array<i64: 1, 1>, scalar_prefetch = 0 : i64, scratch_operands = 1 : i64, tpu.core_type = #tpu.core_type<tc>, window_params = [{transform_indices = @transform_0, window_bounds = array<i64: 16, 128>}, {transform_indices = @transform_1, window_bounds = array<i64: 128, 128>}, {transform_indices = @transform_2, window_bounds = array<i64: 1, 128>}, {transform_indices = @transform_3, window_bounds = array<i64: 128, 128>}, {pipeline_mode = #tpu.pipeline_mode<synchronous>, transform_indices = @transform_4, window_bounds = array<i64: 1, 128>}, {transform_indices = @transform_5, window_bounds = array<i64: 16, 128>}]} {
    %c0_i32 = arith.constant 0 : i32
    %0 = arith.cmpi eq, %arg1, %c0_i32 : i32
    %1 = arith.extui %0 : i1 to i32
    %c0_i32_0 = arith.constant 0 : i32
    %2 = arith.cmpi ne, %1, %c0_i32_0 : i32
    scf.if %2 {
      %cst_16 = arith.constant 0.000000e+00 : f32
      %19 = vector.broadcast %cst_16 : f32 to vector<16x128xf32>
      %c0_17 = arith.constant 0 : index
      %c0_18 = arith.constant 0 : index
      %20 = vector.load %arg8[%c0_17, %c0_18] : memref<16x128xf32, #tpu.memory_space<vmem>>, vector<16x128xf32>
      tpu.vector_store %arg8[%c0_17, %c0_18], %19 {strides = array<i32>} : memref<16x128xf32, #tpu.memory_space<vmem>>, vector<16x128xf32>,
    } else {
    }
    %c0 = arith.constant 0 : index
    %c0_1 = arith.constant 0 : index
    %3 = vector.load %arg2[%c0, %c0_1] : memref<16x128xf32, #tpu.memory_space<vmem>>, vector<16x128xf32>
    %c0_2 = arith.constant 0 : index
    %c0_3 = arith.constant 0 : index
    %4 = vector.load %arg3[%c0_2, %c0_3] : memref<128x128xf32, #tpu.memory_space<vmem>>, vector<128x128xf32>
    %cst = arith.constant dense<0.000000e+00> : vector<16x128xf32>
    %5 = tpu.matmul %3, %4, %cst {dimension_numbers = #tpu.dot_dimension_numbers<[1], [0], [0], [1], [0, 0, 1, 1], [], []>} : vector<16x128xf32>, vector<128x128xf32>, vector<16x128xf32> -> vector<16x128xf32>
    %c0_4 = arith.constant 0 : index
    %c0_5 = arith.constant 0 : index
    %6 = vector.load %arg4[%c0_4, %c0_5] : memref<1x128xf32, #tpu.memory_space<vmem>>, vector<1x128xf32>
    %7 = vector.broadcast %6 : vector<1x128xf32> to vector<16x128xf32>
    %8 = arith.addf %5, %7 : vector<16x128xf32>
    %cst_6 = arith.constant 0.000000e+00 : f32
    %9 = vector.broadcast %cst_6 : f32 to vector<16x128xf32>
    %10 = arith.maximumf %8, %9 : vector<16x128xf32>
    %c0_7 = arith.constant 0 : index
    %c0_8 = arith.constant 0 : index
    %11 = vector.load %arg8[%c0_7, %c0_8] : memref<16x128xf32, #tpu.memory_space<vmem>>, vector<16x128xf32>
    %c0_9 = arith.constant 0 : index
    %c0_10 = arith.constant 0 : index
    %12 = vector.load %arg5[%c0_9, %c0_10] : memref<128x128xf32, #tpu.memory_space<vmem>>, vector<128x128xf32>
    %cst_11 = arith.constant dense<0.000000e+00> : vector<16x128xf32>
    %13 = tpu.matmul %10, %12, %cst_11 {dimension_numbers = #tpu.dot_dimension_numbers<[1], [0], [0], [1], [0, 0, 1, 1], [], []>} : vector<16x128xf32>, vector<128x128xf32>, vector<16x128xf32> -> vector<16x128xf32>
    %14 = arith.addf %11, %13 : vector<16x128xf32>
    %c0_12 = arith.constant 0 : index
    %c0_13 = arith.constant 0 : index
    %15 = vector.load %arg8[%c0_12, %c0_13] : memref<16x128xf32, #tpu.memory_space<vmem>>, vector<16x128xf32>
    tpu.vector_store %arg8[%c0_12, %c0_13], %14 {strides = array<i32>} : memref<16x128xf32, #tpu.memory_space<vmem>>, vector<16x128xf32>,
    %c0_i32_14 = arith.constant 0 : i32
    %16 = arith.cmpi eq, %arg1, %c0_i32_14 : i32
    %17 = arith.extui %16 : i1 to i32
    %c0_i32_15 = arith.constant 0 : i32
    %18 = arith.cmpi ne, %17, %c0_i32_15 : i32
    scf.if %18 {
      %c0_16 = arith.constant 0 : index
      %c0_17 = arith.constant 0 : index
      %19 = vector.load %arg8[%c0_16, %c0_17] : memref<16x128xf32, #tpu.memory_space<vmem>>, vector<16x128xf32>
      %c0_18 = arith.constant 0 : index
      %c0_19 = arith.constant 0 : index
      %20 = vector.load %arg6[%c0_18, %c0_19] : memref<1x128xf32, #tpu.memory_space<vmem>>, vector<1x128xf32>
      %21 = vector.broadcast %20 : vector<1x128xf32> to vector<16x128xf32>
      %22 = arith.addf %19, %21 : vector<16x128xf32>
      %c0_20 = arith.constant 0 : index
      %c0_21 = arith.constant 0 : index
      %23 = vector.load %arg7[%c0_20, %c0_21] : memref<16x128xf32, #tpu.memory_space<vmem>>, vector<16x128xf32>
      tpu.vector_store %arg7[%c0_20, %c0_21], %22 {strides = array<i32>} : memref<16x128xf32, #tpu.memory_space<vmem>>, vector<16x128xf32>,
    } else {
    }
    return
  }
  func.func @transform_0(%arg0: i32, %arg1: i32) -> (i32, i32) {
    %c0_i32 = arith.constant 0 : i32
    %c0_i32_0 = arith.constant 0 : i32
    return %arg0, %c0_i32 : i32, i32
  }
  func.func @transform_1(%arg0: i32, %arg1: i32) -> (i32, i32) {
    %c0_i32 = arith.constant 0 : i32
    %c0_i32_0 = arith.constant 0 : i32
    return %c0_i32, %arg1 : i32, i32
  }
  func.func @transform_2(%arg0: i32, %arg1: i32) -> (i32, i32) {
    %c0_i32 = arith.constant 0 : i32
    %c0_i32_0 = arith.constant 0 : i32
    return %c0_i32, %arg1 : i32, i32
  }
  func.func @transform_3(%arg0: i32, %arg1: i32) -> (i32, i32) {
    %c0_i32 = arith.constant 0 : i32
    %c0_i32_0 = arith.constant 0 : i32
    return %arg1, %c0_i32 : i32, i32
  }
  func.func @transform_4(%arg0: i32, %arg1: i32) -> (i32, i32) {
    %c0_i32 = arith.constant 0 : i32
    %c0_i32_0 = arith.constant 0 : i32
    %c0_i32_1 = arith.constant 0 : i32
    return %c0_i32, %c0_i32_0 : i32, i32
  }
  func.func @transform_5(%arg0: i32, %arg1: i32) -> (i32, i32) {
    %c0_i32 = arith.constant 0 : i32
    %c0_i32_0 = arith.constant 0 : i32
    return %arg0, %c0_i32 : i32, i32
  }
}

</mosaic_0001>

<llo_original>
// kernel: ffn_pallas.1
$region0: #{ffn_pallas.1}
  #allocation0 [shape = 'u32[]', space=smem, size = 0x4, offset = 0x4, fixed_abs, tag = 'smem constant byte address 0x4 - core index']
  #allocation1 [shape = 'u32[72,128]{1,0:T(1,128)}', space=vmem, size = 0x9000, scoped, tag = 'internal scratch']
  #allocation2 [shape = 'f32[16,128]{1,0:T(8,128)}', space=vmem, size = 0x2000, scoped, tag = 'scratch operand']
  %s0 = inlined_call_operand.vmem [shape: f32[16,128], index: 0, kind: input, shape index: {}]
  %s1 = inlined_call_operand.vmem [shape: f32[128,128], index: 1, kind: input, shape index: {}]
  %s2 = inlined_call_operand.vmem [shape: f32[1,128], index: 2, kind: input, shape index: {}]
  %s3 = inlined_call_operand.vmem [shape: f32[128,128], index: 3, kind: input, shape index: {}]
  %s4 = inlined_call_operand.vmem [shape: f32[1,128], index: 4, kind: input, shape index: {}]
  %s5 = inlined_call_operand.hbm [shape: f32[16,128], index: 5, kind: output, shape index: {}]
  %s6 = sld [smem:[#allocation0]]
  $region38: #{ffn_pallas.1} parent=0
    _
  %s8 = ssub.s32 1, %s6
  %s9 = scalar_select 0, %s8, %s6
  $region1: #{ffn_pallas.1} parent=0
    #allocation3 [shape = 'u8[8192]{0}', space=vmem, size = 0x2000, scoped, tag = 'output window, operand 0, single buffered']
    #allocation4 [shape = 's32[1]{0}', space=sflag, size = 0x4, scoped, tag = 'scoped memory for ffn_pallas.1']
    %10 = vsyncpa [#allocation4], 0
    // Predicated region
    $region2: #{ffn_pallas.1} parent=1 // pred_check
      _
    $region3: #{ffn_pallas.1} parent=1 // pred_check_branch
      %12 = sbr.rel (0) target = $region5
    $region4: #{ffn_pallas.1} parent=1 // pred_region
      _
    $region5: #{ffn_pallas.1} parent=1 // pred_fallthru
      _
    // Predicated region
    $region6: #{ffn_pallas.1} parent=1 // pred_check
      _
    $region7: #{ffn_pallas.1} parent=1 // pred_check_branch
      %14 = sbr.rel (0) target = $region9
    $region8: #{ffn_pallas.1} parent=1 // pred_region
      _
    $region9: #{ffn_pallas.1} parent=1 // pred_fallthru
      _
    // Predicated region
    $region10: #{ffn_pallas.1} parent=1 // pred_check
      _
    $region11: #{ffn_pallas.1} parent=1 // pred_check_branch
      %16 = sbr.rel (0) target = $region13
    $region12: #{ffn_pallas.1} parent=1 // pred_region
      _
    $region13: #{ffn_pallas.1} parent=1 // pred_fallthru
      _
    // Predicated region
    $region14: #{ffn_pallas.1} parent=1 // pred_check
      _
    $region15: #{ffn_pallas.1} parent=1 // pred_check_branch
      %18 = sbr.rel (0) target = $region17
    $region16: #{ffn_pallas.1} parent=1 // pred_region
      _
    $region17: #{ffn_pallas.1} parent=1 // pred_fallthru
      _
    // Predicated region
    $region18: #{ffn_pallas.1} parent=1 // pred_check
      _
    $region19: #{ffn_pallas.1} parent=1 // pred_check_branch
      %20 = sbr.rel (0) target = $region21
    $region20: #{ffn_pallas.1} parent=1 // pred_region
      _
    $region21: #{ffn_pallas.1} parent=1 // pred_fallthru
      _
    %p21 = scmp.eq.s32.totalorder 0, 0
    // Predicated region
    $region22: #{ffn_pallas.1} parent=1 // pred_check
      %p22 = pneg %p21
    $region23: #{ffn_pallas.1} parent=1 // pred_check_branch
      %24 = sbr.rel (%p22) target = $region25
    $region24: #{ffn_pallas.1} parent=1 // pred_region
      %25 = vst [vmem:[#allocation2] sm:$0xff] 0.0
      %26 = vst [vmem:[#allocation2 + $0x8] sm:$0xff] 0.0
    $region25: #{ffn_pallas.1} parent=1 // pred_fallthru
      _
    %v27 = vld [vmem:[%s0] sm:$0xff]
    %v28 = vld [vmem:[%s0 + $0x8] sm:$0xff]
    %v29 = vld [vmem:[%s1] sm:$0xff]
    %v30 = vld [vmem:[%s1 + $0x8] sm:$0xff]
    %v31 = vld [vmem:[%s1 + $0x10] sm:$0xff]
    %v32 = vld [vmem:[%s1 + $0x18] sm:$0xff]
    %v33 = vld [vmem:[%s1 + $0x20] sm:$0xff]
    %v34 = vld [vmem:[%s1 + $0x28] sm:$0xff]
    %v35 = vld [vmem:[%s1 + $0x30] sm:$0xff]
    %v36 = vld [vmem:[%s1 + $0x38] sm:$0xff]
    %v37 = vld [vmem:[%s1 + $0x40] sm:$0xff]
    %v38 = vld [vmem:[%s1 + $0x48] sm:$0xff]
    %v39 = vld [vmem:[%s1 + $0x50] sm:$0xff]
    %v40 = vld [vmem:[%s1 + $0x58] sm:$0xff]
    %v41 = vld [vmem:[%s1 + $0x60] sm:$0xff]
    %v42 = vld [vmem:[%s1 + $0x68] sm:$0xff]
    %v43 = vld [vmem:[%s1 + $0x70] sm:$0xff]
    %v44 = vld [vmem:[%s1 + $0x78] sm:$0xff]
    %v45 = vld [vmem:[%s2] sm:$0x1]
    %v47 = vperm.slane %v45, 0
    %49 = vmatpush.msra.mxu0 %v44
    %50 = vmatpush.msra.mxu0 %v43
    %51 = vmatpush.msra.mxu0 %v42
    %52 = vmatpush.msra.mxu0 %v41
    %53 = vmatpush.msra.mxu0 %v40
    %54 = vmatpush.msra.mxu0 %v39
    %55 = vmatpush.msra.mxu0 %v38
    %56 = vmatpush.msra.mxu0 %v37
    %57 = vmatpush.msra.mxu0 %v36
    %58 = vmatpush.msra.mxu0 %v35
    %59 = vmatpush.msra.mxu0 %v34
    %60 = vmatpush.msra.mxu0 %v33
    %61 = vmatpush.msra.mxu0 %v32
    %62 = vmatpush.msra.mxu0 %v31
    %63 = vmatpush.msra.mxu0 %v30
    %64 = vmatpush.msra.mxu0 %v29
    %65 = vmatmul.f32.gmra.mxu0 %v27
    %v66 = vpop.f32.mrf.mxu0
    %v67 = vadd.f32 %v47, %v66
    %68 = vmatmul.f32.gmra.mxu0 %v28
    %v69 = vpop.f32.mrf.mxu0
    %v70 = vadd.f32 %v47, %v69
    %71 = vdwg.mxu0
    %v72 = vmax.f32 %v67, 0.0
    %v73 = vmax.f32 %v70, 0.0
    %v74 = vld [vmem:[#allocation2] sm:$0xff]
    %v75 = vld [vmem:[#allocation2 + $0x8] sm:$0xff]
    %v76 = vld [vmem:[%s3] sm:$0xff]
    %v77 = vld [vmem:[%s3 + $0x8] sm:$0xff]
    %v78 = vld [vmem:[%s3 + $0x10] sm:$0xff]
    %v79 = vld [vmem:[%s3 + $0x18] sm:$0xff]
    %v80 = vld [vmem:[%s3 + $0x20] sm:$0xff]
    %v81 = vld [vmem:[%s3 + $0x28] sm:$0xff]
    %v82 = vld [vmem:[%s3 + $0x30] sm:$0xff]
    %v83 = vld [vmem:[%s3 + $0x38] sm:$0xff]
    %v84 = vld [vmem:[%s3 + $0x40] sm:$0xff]
    %v85 = vld [vmem:[%s3 + $0x48] sm:$0xff]
    %v86 = vld [vmem:[%s3 + $0x50] sm:$0xff]
    %v87 = vld [vmem:[%s3 + $0x58] sm:$0xff]
    %v88 = vld [vmem:[%s3 + $0x60] sm:$0xff]
    %v89 = vld [vmem:[%s3 + $0x68] sm:$0xff]
    %v90 = vld [vmem:[%s3 + $0x70] sm:$0xff]
    %v91 = vld [vmem:[%s3 + $0x78] sm:$0xff]
    %92 = vmatpush.msra.mxu0 %v91
    %93 = vmatpush.msra.mxu0 %v90
    %94 = vmatpush.msra.mxu0 %v89
    %95 = vmatpush.msra.mxu0 %v88
    %96 = vmatpush.msra.mxu0 %v87
    %97 = vmatpush.msra.mxu0 %v86
    %98 = vmatpush.msra.mxu0 %v85
    %99 = vmatpush.msra.mxu0 %v84
    %100 = vmatpush.msra.mxu0 %v83
    %101 = vmatpush.msra.mxu0 %v82
    %102 = vmatpush.msra.mxu0 %v81
    %103 = vmatpush.msra.mxu0 %v80
    %104 = vmatpush.msra.mxu0 %v79
    %105 = vmatpush.msra.mxu0 %v78
    %106 = vmatpush.msra.mxu0 %v77
    %107 = vmatpush.msra.mxu0 %v76
    %108 = vmatmul.f32.gmra.mxu0 %v72
    %v109 = vpop.f32.mrf.mxu0
    %v110 = vadd.f32 0.0, %v109
    %111 = vmatmul.f32.gmra.mxu0 %v73
    %v112 = vpop.f32.mrf.mxu0
    %v113 = vadd.f32 0.0, %v112
    %114 = vdwg.mxu0
    %v115 = vadd.f32 %v74, %v110
    %v116 = vadd.f32 %v75, %v113
    %117 = vst [vmem:[#allocation2] sm:$0xff] %v115
    %118 = vst [vmem:[#allocation2 + $0x8] sm:$0xff] %v116
    // Predicated region
    $region26: #{ffn_pallas.1} parent=1 // pred_check
      %p119 = pneg %p21
    $region27: #{ffn_pallas.1} parent=1 // pred_check_branch
      %121 = sbr.rel (%p119) target = $region29
    $region28: #{ffn_pallas.1} parent=1 // pred_region
      %v122 = vld [vmem:[#allocation2] sm:$0xff]
      %v123 = vld [vmem:[#allocation2 + $0x8] sm:$0xff]
      %v124 = vld [vmem:[%s4] sm:$0x1]
      %v126 = vperm.slane %v124, 0
      %v128 = vadd.f32 %v122, %v126
      %v129 = vadd.f32 %v123, %v126
      %130 = vst [vmem:[#allocation3] sm:$0xff] %v128
      %131 = vst [vmem:[#allocation3 + $0x8] sm:$0xff] %v129
    $region29: #{ffn_pallas.1} parent=1 // pred_fallthru
      _
    // Predicated region
    $region30: #{ffn_pallas.1} parent=1 // pred_check
      _
    $region31: #{ffn_pallas.1} parent=1 // pred_check_branch
      %133 = sbr.rel (0) target = $region33
    $region32: #{ffn_pallas.1} parent=1 // pred_region
      %135 = vsyncadd [#allocation4], 0
      %s136 = sshll.u32 [#allocation3], 4
      %s137 = int_to_ptr.vmem [resolvable:$true] %s136
      %s138 = sshll.u32 %s5, 4
      %s139 = int_to_ptr.hbm [resolvable:$true] %s138
      %144 = dma.vmem_to_hbm [thread:$0]  %s137, 256, %s139, [#allocation4], 128, 128, 8
    $region33: #{ffn_pallas.1} parent=1 // pred_fallthru
      _
    // Predicated region
    $region34: #{ffn_pallas.1} parent=1 // pred_check
      _
    $region35: #{ffn_pallas.1} parent=1 // pred_check_branch
      %146 = sbr.rel (0) target = $region37
    $region36: #{ffn_pallas.1} parent=1 // pred_region
      %148 = dma.done [#allocation4], 256
    $region37: #{ffn_pallas.1} parent=1 // pred_fallthru
      _
    %149 = vsyncpa [#allocation4], 1

</llo_original>
